<compile_context>
chip_gen: v5e
topology: v5e:2x2
jax: 0.10.0
libtpu: 0.0.40
codegen_flags: <defaults>
</compile_context>

<pallas_src>
import functools

import jax
import jax.numpy as jnp
from jax.experimental import pallas as pl
from jax.experimental.pallas import tpu as pltpu
import numpy as np


def _implicit_gemm_kernel(x_ref, w_ref, b_ref, o_ref, *, k, w_img, s_pad):
    """One batch-tile of the implicit-GEMM valid conv.

    x_ref: (Bn, Cin, Sx_pad)   flattened + zero-padded images (compute dtype)
    w_ref: (K*K, Cout, Cin)    weights, k-major (kh*K+kw leading), compute dtype
    b_ref: (Cout, 1)           effective bias (time channel folded in), f32
    o_ref: (Bn, Cout, S_pad)   lane-dense wide-output slab
    """
    bn = o_ref.shape[0]
    bias = b_ref[...]                                   # (Cout, 1) f32
    for b in range(bn):                                 # small static unroll
        row = x_ref[b]                                  # (Cin, Sx_pad) in VMEM
        acc = None
        for kh in range(k):
            for kw in range(k):
                off = kh * w_img + kw                   # static lane offset
                win = row[:, off:off + s_pad]           # (Cin, S_pad) shifted window
                part = jnp.dot(w_ref[kh * k + kw], win,
                               preferred_element_type=jnp.float32)
                acc = part if acc is None else acc + part
        o_ref[b] = (acc + bias).astype(o_ref.dtype)


def _pick_batch_tile(n, per_image_bytes, *, target_step_bytes=2 << 20,
                     min_steps=2, max_bn=8):
    """Largest divisor of n that keeps per-step bytes near the target, leaves
    >= min_steps grid steps for pipelining, and caps kernel unrolling."""
    if n <= 1:
        return max(n, 1)
    cap = max(1, target_step_bytes // max(per_image_bytes, 1))
    cap = min(cap, max_bn, max(1, n // min_steps))
    best = 1
    for d in range(1, n + 1):
        if n % d == 0 and d <= cap:
            best = d
    return best


def concat_conv2d(t, x, weight, bias, *, stride=1, padding=0,
                  compute_dtype=jnp.bfloat16):
    """Pallas implementation of ConcatConv2d.forward(t, x).

    t:      scalar
    x:      (N, Cin, H, W)        -- NCHW, like PyTorch
    weight: (Cout, Cin+1, K, K)   -- OIHW, like nn.Conv2d
    bias:   (Cout,)
    returns (N, Cout, Ho, Wo), Ho = H-K+1, Wo = W-K+1 (valid conv).
    """
    assert stride == 1 and padding == 0, "kernel implements the module defaults"
    N, Cin, H, W = x.shape
    Cout, Cin_p1, K, K2 = weight.shape
    assert K == K2 and Cin_p1 == Cin + 1
    Ho, Wo = H - K + 1, W - K + 1

    # Fold the constant time channel into the bias (exact for a VALID conv:
    # every output position sees the full KxK window of the t channel).
    w_f32 = weight.astype(jnp.float32)
    bias_eff = (bias.astype(jnp.float32)
                + jnp.asarray(t, jnp.float32) * w_f32[:, 0].sum(axis=(1, 2)))
    bias_eff = bias_eff.reshape(Cout, 1)

    # "Wide" output: keep all W columns per output row (last K-1 columns of
    # each row are garbage and sliced off afterwards) so every (kh, kw)
    # window is a contiguous slice of the flattened spatial axis.
    s_wide = Ho * W
    s_pad = pl.cdiv(s_wide, 128) * 128           # lane-dense output slab
    max_off = (K - 1) * (W + 1)                  # largest window start offset
    sx_pad = s_pad + max_off                     # padded flat-spatial length

    cdt_bytes = jnp.dtype(compute_dtype).itemsize
    out_dtype = x.dtype
    out_bytes = jnp.dtype(out_dtype).itemsize

    # Cast BEFORE padding so the single (small, ~1.15x) copy XLA materializes
    # is already in the compute dtype.
    x_flat = x.reshape(N, Cin, H * W).astype(compute_dtype)
    x_flat = jnp.pad(x_flat, ((0, 0), (0, 0), (0, sx_pad - H * W)))

    # Weights, k-major: w_k[kh*K+kw, o, c] == weight[o, c+1, kh, kw].
    w_k = jnp.transpose(weight[:, 1:], (2, 3, 0, 1)).reshape(K * K, Cout, Cin)
    w_k = w_k.astype(compute_dtype)

    per_image_bytes = Cin * sx_pad * cdt_bytes + Cout * s_pad * out_bytes
    bn = _pick_batch_tile(N, per_image_bytes)
    grid = (N // bn,)

    # Rough per-step working set (double-buffered x / out + resident w, b);
    # keep the VMEM cap generous but well inside every generation's budget.
    step_bytes = (2 * bn * per_image_bytes
                  + K * K * Cout * Cin * cdt_bytes + Cout * 4)
    vmem_limit = int(min(96 * 1024 * 1024,
                         max(32 * 1024 * 1024, 4 * step_bytes)))

    kernel = functools.partial(_implicit_gemm_kernel, k=K, w_img=W, s_pad=s_pad)

    out_wide = pl.pallas_call(
        kernel,
        out_shape=jax.ShapeDtypeStruct((N, Cout, s_pad), out_dtype),
        grid_spec=pltpu.PrefetchScalarGridSpec(
            num_scalar_prefetch=0,
            grid=grid,
            in_specs=[
                pl.BlockSpec((bn, Cin, sx_pad), lambda i: (i, 0, 0)),    # x stream
                pl.BlockSpec((K * K, Cout, Cin), lambda i: (0, 0, 0)),   # weights resident
                pl.BlockSpec((Cout, 1), lambda i: (0, 0)),               # bias resident
            ],
            out_specs=pl.BlockSpec((bn, Cout, s_pad), lambda i: (i, 0, 0)),
        ),
        compiler_params=pltpu.CompilerParams(
            dimension_semantics=("parallel",),
            vmem_limit_bytes=vmem_limit,
        ),
    )(x_flat, w_k, bias_eff)

    # (N, Cout, S_pad) -> (N, Cout, Ho, W) -> drop the K-1 invalid columns.
    out = out_wide[:, :, :s_wide].reshape(N, Cout, Ho, W)[:, :, :, :Wo]
    return out


def _reference_concat_conv2d(t, x, weight, bias):
    """Pure-JAX reference (mirrors the PyTorch forward exactly)."""
    tt = jnp.full_like(x[:, :1, :, :], t)
    ttx = jnp.concatenate([tt, x], axis=1)
    out = jax.lax.conv_general_dilated(
        ttx, weight, window_strides=(1, 1), padding="VALID",
        dimension_numbers=("NCHW", "OIHW", "NCHW"))
    return out + bias[None, :, None, None]


if __name__ == "__main__":
    # Module config (defaults): dim_in=4, dim_out=8, ksize=3, stride=1,
    # padding=0, bias=True, transpose=False.
    dim_in, dim_out, ksize = 4, 8, 3
    N, H, W = 2, 16, 16

    key = jax.random.PRNGKey(0)
    kx, kw, kb = jax.random.split(key, 3)

    x = jax.random.normal(kx, (N, dim_in, H, W), dtype=jnp.float32)
    t = jnp.float32(0.5)

    # Deterministic init mimicking nn.Conv2d: U(-1/sqrt(fan_in), 1/sqrt(fan_in))
    fan_in = (dim_in + 1) * ksize * ksize
    bound = 1.0 / np.sqrt(fan_in)
    weight = jax.random.uniform(kw, (dim_out, dim_in + 1, ksize, ksize),
                                minval=-bound, maxval=bound, dtype=jnp.float32)
    bias = jax.random.uniform(kb, (dim_out,), minval=-bound, maxval=bound,
                              dtype=jnp.float32)

    ref = jax.block_until_ready(_reference_concat_conv2d(t, x, weight, bias))

    # Exact-math check (f32 operands, f32 accumulate).
    out_f32 = jax.block_until_ready(
        concat_conv2d(t, x, weight, bias, compute_dtype=jnp.float32))
    assert out_f32.shape == (N, dim_out, H - ksize + 1, W - ksize + 1), out_f32.shape
    np.testing.assert_allclose(np.asarray(out_f32), np.asarray(ref),
                               rtol=1e-4, atol=1e-4)

    # Production path: bf16 operands on the MXU, f32 accumulation.
    out_bf16 = jax.block_until_ready(concat_conv2d(t, x, weight, bias))
    assert out_bf16.shape == ref.shape
    np.testing.assert_allclose(np.asarray(out_bf16), np.asarray(ref),
                               rtol=2e-2, atol=2e-2)

    print("KERNEL_OK")
</pallas_src>

<mosaic_0001>
module attributes {stable_mosaic.version = 11 : i64} {
  func.func @_implicit_gemm_kernel(%arg0: i32, %arg1: memref<1x4x290xf32, #tpu.memory_space<vmem>>, %arg2: memref<9x8x4xf32, #tpu.memory_space<vmem>>, %arg3: memref<8x1xf32, #tpu.memory_space<vmem>>, %arg4: memref<1x8x256xf32, #tpu.memory_space<vmem>>) attributes {dimension_semantics = [#tpu.dimension_semantics<parallel>], iteration_bounds = array<i64: 2>, scalar_prefetch = 0 : i64, scratch_operands = 0 : i64, tpu.core_type = #tpu.core_type<tc>, window_params = [{transform_indices = @transform_0, window_bounds = array<i64: 1, 4, 290>}, {pipeline_mode = #tpu.pipeline_mode<synchronous>, transform_indices = @transform_1, window_bounds = array<i64: 9, 8, 4>}, {pipeline_mode = #tpu.pipeline_mode<synchronous>, transform_indices = @transform_2, window_bounds = array<i64: 8, 1>}, {transform_indices = @transform_3, window_bounds = array<i64: 1, 8, 256>}]} {
    %c0 = arith.constant 0 : index
    %c0_0 = arith.constant 0 : index
    %0 = vector.load %arg3[%c0, %c0_0] : memref<8x1xf32, #tpu.memory_space<vmem>>, vector<8x1xf32>
    %c0_1 = arith.constant 0 : index
    %c0_2 = arith.constant 0 : index
    %c0_3 = arith.constant 0 : index
    %1 = vector.load %arg1[%c0_1, %c0_2, %c0_3] : memref<1x4x290xf32, #tpu.memory_space<vmem>>, vector<1x4x290xf32>
    %2 = vector.shape_cast %1 : vector<1x4x290xf32> to vector<4x290xf32>
    %3 = vector.extract_strided_slice %2 {offsets = [0, 0], sizes = [4, 256], strides = [1, 1]} : vector<4x290xf32> to vector<4x256xf32>
    %c0_4 = arith.constant 0 : index
    %c0_5 = arith.constant 0 : index
    %c0_6 = arith.constant 0 : index
    %4 = vector.load %arg2[%c0_4, %c0_5, %c0_6] : memref<9x8x4xf32, #tpu.memory_space<vmem>>, vector<1x8x4xf32>
    %5 = vector.shape_cast %4 : vector<1x8x4xf32> to vector<8x4xf32>
    %cst = arith.constant dense<0.000000e+00> : vector<8x256xf32>
    %6 = tpu.matmul %5, %3, %cst {dimension_numbers = #tpu.dot_dimension_numbers<[1], [0], [0], [1], [0, 0, 1, 1], [], []>} : vector<8x4xf32>, vector<4x256xf32>, vector<8x256xf32> -> vector<8x256xf32>
    %7 = vector.extract_strided_slice %2 {offsets = [0, 1], sizes = [4, 256], strides = [1, 1]} : vector<4x290xf32> to vector<4x256xf32>
    %c1 = arith.constant 1 : index
    %c0_7 = arith.constant 0 : index
    %c0_8 = arith.constant 0 : index
    %8 = vector.load %arg2[%c1, %c0_7, %c0_8] : memref<9x8x4xf32, #tpu.memory_space<vmem>>, vector<1x8x4xf32>
    %9 = vector.shape_cast %8 : vector<1x8x4xf32> to vector<8x4xf32>
    %cst_9 = arith.constant dense<0.000000e+00> : vector<8x256xf32>
    %10 = tpu.matmul %9, %7, %cst_9 {dimension_numbers = #tpu.dot_dimension_numbers<[1], [0], [0], [1], [0, 0, 1, 1], [], []>} : vector<8x4xf32>, vector<4x256xf32>, vector<8x256xf32> -> vector<8x256xf32>
    %11 = arith.addf %6, %10 : vector<8x256xf32>
    %12 = vector.extract_strided_slice %2 {offsets = [0, 2], sizes = [4, 256], strides = [1, 1]} : vector<4x290xf32> to vector<4x256xf32>
    %c2 = arith.constant 2 : index
    %c0_10 = arith.constant 0 : index
    %c0_11 = arith.constant 0 : index
    %13 = vector.load %arg2[%c2, %c0_10, %c0_11] : memref<9x8x4xf32, #tpu.memory_space<vmem>>, vector<1x8x4xf32>
    %14 = vector.shape_cast %13 : vector<1x8x4xf32> to vector<8x4xf32>
    %cst_12 = arith.constant dense<0.000000e+00> : vector<8x256xf32>
    %15 = tpu.matmul %14, %12, %cst_12 {dimension_numbers = #tpu.dot_dimension_numbers<[1], [0], [0], [1], [0, 0, 1, 1], [], []>} : vector<8x4xf32>, vector<4x256xf32>, vector<8x256xf32> -> vector<8x256xf32>
    %16 = arith.addf %11, %15 : vector<8x256xf32>
    %17 = vector.extract_strided_slice %2 {offsets = [0, 16], sizes = [4, 256], strides = [1, 1]} : vector<4x290xf32> to vector<4x256xf32>
    %c3 = arith.constant 3 : index
    %c0_13 = arith.constant 0 : index
    %c0_14 = arith.constant 0 : index
    %18 = vector.load %arg2[%c3, %c0_13, %c0_14] : memref<9x8x4xf32, #tpu.memory_space<vmem>>, vector<1x8x4xf32>
    %19 = vector.shape_cast %18 : vector<1x8x4xf32> to vector<8x4xf32>
    %cst_15 = arith.constant dense<0.000000e+00> : vector<8x256xf32>
    %20 = tpu.matmul %19, %17, %cst_15 {dimension_numbers = #tpu.dot_dimension_numbers<[1], [0], [0], [1], [0, 0, 1, 1], [], []>} : vector<8x4xf32>, vector<4x256xf32>, vector<8x256xf32> -> vector<8x256xf32>
    %21 = arith.addf %16, %20 : vector<8x256xf32>
    %22 = vector.extract_strided_slice %2 {offsets = [0, 17], sizes = [4, 256], strides = [1, 1]} : vector<4x290xf32> to vector<4x256xf32>
    %c4 = arith.constant 4 : index
    %c0_16 = arith.constant 0 : index
    %c0_17 = arith.constant 0 : index
    %23 = vector.load %arg2[%c4, %c0_16, %c0_17] : memref<9x8x4xf32, #tpu.memory_space<vmem>>, vector<1x8x4xf32>
    %24 = vector.shape_cast %23 : vector<1x8x4xf32> to vector<8x4xf32>
    %cst_18 = arith.constant dense<0.000000e+00> : vector<8x256xf32>
    %25 = tpu.matmul %24, %22, %cst_18 {dimension_numbers = #tpu.dot_dimension_numbers<[1], [0], [0], [1], [0, 0, 1, 1], [], []>} : vector<8x4xf32>, vector<4x256xf32>, vector<8x256xf32> -> vector<8x256xf32>
    %26 = arith.addf %21, %25 : vector<8x256xf32>
    %27 = vector.extract_strided_slice %2 {offsets = [0, 18], sizes = [4, 256], strides = [1, 1]} : vector<4x290xf32> to vector<4x256xf32>
    %c5 = arith.constant 5 : index
    %c0_19 = arith.constant 0 : index
    %c0_20 = arith.constant 0 : index
    %28 = vector.load %arg2[%c5, %c0_19, %c0_20] : memref<9x8x4xf32, #tpu.memory_space<vmem>>, vector<1x8x4xf32>
    %29 = vector.shape_cast %28 : vector<1x8x4xf32> to vector<8x4xf32>
    %cst_21 = arith.constant dense<0.000000e+00> : vector<8x256xf32>
    %30 = tpu.matmul %29, %27, %cst_21 {dimension_numbers = #tpu.dot_dimension_numbers<[1], [0], [0], [1], [0, 0, 1, 1], [], []>} : vector<8x4xf32>, vector<4x256xf32>, vector<8x256xf32> -> vector<8x256xf32>
    %31 = arith.addf %26, %30 : vector<8x256xf32>
    %32 = vector.extract_strided_slice %2 {offsets = [0, 32], sizes = [4, 256], strides = [1, 1]} : vector<4x290xf32> to vector<4x256xf32>
    %c6 = arith.constant 6 : index
    %c0_22 = arith.constant 0 : index
    %c0_23 = arith.constant 0 : index
    %33 = vector.load %arg2[%c6, %c0_22, %c0_23] : memref<9x8x4xf32, #tpu.memory_space<vmem>>, vector<1x8x4xf32>
    %34 = vector.shape_cast %33 : vector<1x8x4xf32> to vector<8x4xf32>
    %cst_24 = arith.constant dense<0.000000e+00> : vector<8x256xf32>
    %35 = tpu.matmul %34, %32, %cst_24 {dimension_numbers = #tpu.dot_dimension_numbers<[1], [0], [0], [1], [0, 0, 1, 1], [], []>} : vector<8x4xf32>, vector<4x256xf32>, vector<8x256xf32> -> vector<8x256xf32>
    %36 = arith.addf %31, %35 : vector<8x256xf32>
    %37 = vector.extract_strided_slice %2 {offsets = [0, 33], sizes = [4, 256], strides = [1, 1]} : vector<4x290xf32> to vector<4x256xf32>
    %c7 = arith.constant 7 : index
    %c0_25 = arith.constant 0 : index
    %c0_26 = arith.constant 0 : index
    %38 = vector.load %arg2[%c7, %c0_25, %c0_26] : memref<9x8x4xf32, #tpu.memory_space<vmem>>, vector<1x8x4xf32>
    %39 = vector.shape_cast %38 : vector<1x8x4xf32> to vector<8x4xf32>
    %cst_27 = arith.constant dense<0.000000e+00> : vector<8x256xf32>
    %40 = tpu.matmul %39, %37, %cst_27 {dimension_numbers = #tpu.dot_dimension_numbers<[1], [0], [0], [1], [0, 0, 1, 1], [], []>} : vector<8x4xf32>, vector<4x256xf32>, vector<8x256xf32> -> vector<8x256xf32>
    %41 = arith.addf %36, %40 : vector<8x256xf32>
    %42 = vector.extract_strided_slice %2 {offsets = [0, 34], sizes = [4, 256], strides = [1, 1]} : vector<4x290xf32> to vector<4x256xf32>
    %c8 = arith.constant 8 : index
    %c0_28 = arith.constant 0 : index
    %c0_29 = arith.constant 0 : index
    %43 = vector.load %arg2[%c8, %c0_28, %c0_29] : memref<9x8x4xf32, #tpu.memory_space<vmem>>, vector<1x8x4xf32>
    %44 = vector.shape_cast %43 : vector<1x8x4xf32> to vector<8x4xf32>
    %cst_30 = arith.constant dense<0.000000e+00> : vector<8x256xf32>
    %45 = tpu.matmul %44, %42, %cst_30 {dimension_numbers = #tpu.dot_dimension_numbers<[1], [0], [0], [1], [0, 0, 1, 1], [], []>} : vector<8x4xf32>, vector<4x256xf32>, vector<8x256xf32> -> vector<8x256xf32>
    %46 = arith.addf %41, %45 : vector<8x256xf32>
    %47 = vector.broadcast %0 : vector<8x1xf32> to vector<8x256xf32>
    %48 = arith.addf %46, %47 : vector<8x256xf32>
    %c0_31 = arith.constant 0 : index
    %c0_32 = arith.constant 0 : index
    %c0_33 = arith.constant 0 : index
    %49 = vector.load %arg4[%c0_31, %c0_32, %c0_33] : memref<1x8x256xf32, #tpu.memory_space<vmem>>, vector<1x8x256xf32>
    %50 = vector.shape_cast %49 : vector<1x8x256xf32> to vector<8x256xf32>
    %51 = vector.shape_cast %48 : vector<8x256xf32> to vector<1x8x256xf32>
    tpu.vector_store %arg4[%c0_31, %c0_32, %c0_33], %51 {strides = array<i32>} : memref<1x8x256xf32, #tpu.memory_space<vmem>>, vector<1x8x256xf32>,
    return
  }
  func.func @transform_0(%arg0: i32) -> (i32, i32, i32) {
    %c0_i32 = arith.constant 0 : i32
    %c0_i32_0 = arith.constant 0 : i32
    %c0_i32_1 = arith.constant 0 : i32
    return %arg0, %c0_i32, %c0_i32_0 : i32, i32, i32
  }
  func.func @transform_1(%arg0: i32) -> (i32, i32, i32) {
    %c0_i32 = arith.constant 0 : i32
    %c0_i32_0 = arith.constant 0 : i32
    %c0_i32_1 = arith.constant 0 : i32
    %c0_i32_2 = arith.constant 0 : i32
    return %c0_i32, %c0_i32_0, %c0_i32_1 : i32, i32, i32
  }
  func.func @transform_2(%arg0: i32) -> (i32, i32) {
    %c0_i32 = arith.constant 0 : i32
    %c0_i32_0 = arith.constant 0 : i32
    %c0_i32_1 = arith.constant 0 : i32
    return %c0_i32, %c0_i32_0 : i32, i32
  }
  func.func @transform_3(%arg0: i32) -> (i32, i32, i32) {
    %c0_i32 = arith.constant 0 : i32
    %c0_i32_0 = arith.constant 0 : i32
    %c0_i32_1 = arith.constant 0 : i32
    return %arg0, %c0_i32, %c0_i32_0 : i32, i32, i32
  }
}

</mosaic_0001>

<llo_original>
// kernel: tpu_custom_call.1
$region0: #{tpu_custom_call.1}
  #allocation0 [shape = 'u32[]', space=smem, size = 0x4, offset = 0x4, fixed_abs, tag = 'smem constant byte address 0x4 - core index']
  #allocation1 [shape = 'u32[72,128]{1,0:T(1,128)}', space=vmem, size = 0x9000, scoped, tag = 'internal scratch']
  %s0 = inlined_call_operand.vmem [shape: f32[2,4,290], index: 0, kind: input, shape index: {}]
  %s1 = inlined_call_operand.vmem [shape: f32[9,8,4], index: 1, kind: input, shape index: {}]
  %s2 = inlined_call_operand.vmem [shape: f32[8,1], index: 2, kind: input, shape index: {}]
  %s3 = inlined_call_operand.hbm [shape: f32[2,8,256], index: 3, kind: output, shape index: {}]
  %s4 = sld [smem:[#allocation0]]
  $region45: #{tpu_custom_call.1} parent=0
    _
  %s6 = ssub.s32 1, %s4
  %s7 = scalar_select 0, %s6, %s4
  $region1: #{tpu_custom_call.1} parent=0
    #allocation2 [shape = 'u8[16384]{0}', space=vmem, size = 0x4000, scoped, tag = 'output window, operand 0']
    #allocation3 [shape = 's32[2]{0}', space=sflag, size = 0x8, scoped, tag = 'scoped memory for tpu_custom_call.1']
    %8 = vsyncpa [#allocation3], 0
    %s9 = scalar_lea.sflag [#allocation3], 1
    %10 = vsyncpa %s9, 0
    loop: start=0, step=1, limit=4
    $region2: #{tpu_custom_call.1} parent=1 // loop_pre_header
      _
    $region3: #{tpu_custom_call.1} parent=1 // loop_header
      %s12 = sphi 0, %s16
      %p13 = scmp.ge.s32.totalorder %s12, 4
      %s22 = sphi 0, %s24
      %s25 = sphi 0, %s22
      %s26 = sphi 0, %s25
      %s42 = sphi 0, %s26
      %s46 = sphi 0, %s46
      %s48 = sphi 0, %s46
      %s49 = sphi 0, %s48
      %s63 = sphi 0, %s49
      %s67 = sphi 0, %s67
      %s69 = sphi 0, %s67
      %s70 = sphi 0, %s69
      %s84 = sphi 0, %s70
      %s90 = sphi 0, %s92
      %s93 = sphi 0, %s90
      %s94 = sphi 0, %s93
      %s110 = sphi 0, %s94
    $region4: #{tpu_custom_call.1} parent=1 // loop_header_branch
      %15 = sbr.rel (%p13) target = $region8
    $region5: #{tpu_custom_call.1} parent=1 // loop_body
      %s17 = ssub.s32 %s12, 1
      %s18 = ssub.s32 %s12, 2
      %s19 = sadd.s32 %s12, 1
      %s20 = ssub.s32 %s12, %s19
      %p21 = scmp.eq.s32.totalorder %s20, 0
      %s23 = sadd.s32 %s22, 1
      %s24 = scalar_select %p21, %s22, %s23
      %p27 = pneg %p21
      %p28 = scmp.eq.s32.totalorder %s12, 1
      %p29 = por %p27, %p28
      %p30 = scmp.ne.s32.totalorder %s22, %s25
      %p31 = scmp.eq.s32.totalorder %s12, 0
      %p32 = por %p30, %p31
      %p33 = scmp.ne.s32.totalorder %s22, %s25
      %p34 = scmp.eq.s32.totalorder %s17, 1
      %p35 = por %p33, %p34
      %p36 = scmp.ne.s32.totalorder %s25, %s26
      %p37 = scmp.eq.s32.totalorder %s17, 0
      %p38 = por %p36, %p37
      %p39 = scmp.ne.s32.totalorder %s25, %s26
      %p40 = scmp.eq.s32.totalorder %s18, 1
      %p41 = por %p39, %p40
      %p43 = scmp.ne.s32.totalorder %s26, %s42
      %p44 = scmp.eq.s32.totalorder %s18, 0
      %p45 = por %p43, %p44
      %s47 = sadd.s32 %s46, 1
      %p50 = scmp.eq.s32.totalorder %s12, 1
      %p51 = scmp.ne.s32.totalorder %s46, %s48
      %p52 = scmp.eq.s32.totalorder %s12, 0
      %p53 = por %p51, %p52
      %p54 = scmp.ne.s32.totalorder %s46, %s48
      %p55 = scmp.eq.s32.totalorder %s17, 1
      %p56 = por %p54, %p55
      %p57 = scmp.ne.s32.totalorder %s48, %s49
      %p58 = scmp.eq.s32.totalorder %s17, 0
      %p59 = por %p57, %p58
      %p60 = scmp.ne.s32.totalorder %s48, %s49
      %p61 = scmp.eq.s32.totalorder %s18, 1
      %p62 = por %p60, %p61
      %p64 = scmp.ne.s32.totalorder %s49, %s63
      %p65 = scmp.eq.s32.totalorder %s18, 0
      %p66 = por %p64, %p65
      %s68 = sadd.s32 %s67, 1
      %p71 = scmp.eq.s32.totalorder %s12, 1
      %p72 = scmp.ne.s32.totalorder %s67, %s69
      %p73 = scmp.eq.s32.totalorder %s12, 0
      %p74 = por %p72, %p73
      %p75 = scmp.ne.s32.totalorder %s67, %s69
      %p76 = scmp.eq.s32.totalorder %s17, 1
      %p77 = por %p75, %p76
      %p78 = scmp.ne.s32.totalorder %s69, %s70
      %p79 = scmp.eq.s32.totalorder %s17, 0
      %p80 = por %p78, %p79
      %p81 = scmp.ne.s32.totalorder %s69, %s70
      %p82 = scmp.eq.s32.totalorder %s18, 1
      %p83 = por %p81, %p82
      %p85 = scmp.ne.s32.totalorder %s70, %s84
      %p86 = scmp.eq.s32.totalorder %s18, 0
      %p87 = por %p85, %p86
      %s88 = ssub.s32 %s12, %s19
      %p89 = scmp.eq.s32.totalorder %s88, 0
      %s91 = sadd.s32 %s90, 1
      %s92 = scalar_select %p89, %s90, %s91
      %p95 = pneg %p89
      %p96 = scmp.eq.s32.totalorder %s12, 1
      %p97 = por %p95, %p96
      %p98 = scmp.ne.s32.totalorder %s90, %s93
      %p99 = scmp.eq.s32.totalorder %s12, 0
      %p100 = por %p98, %p99
      %p101 = scmp.ne.s32.totalorder %s90, %s93
      %p102 = scmp.eq.s32.totalorder %s17, 1
      %p103 = por %p101, %p102
      %p104 = scmp.ne.s32.totalorder %s93, %s94
      %p105 = scmp.eq.s32.totalorder %s17, 0
      %p106 = por %p104, %p105
      %p107 = scmp.ne.s32.totalorder %s93, %s94
      %p108 = scmp.eq.s32.totalorder %s18, 1
      %p109 = por %p107, %p108
      %p111 = scmp.ne.s32.totalorder %s94, %s110
      %p112 = scmp.eq.s32.totalorder %s18, 0
      %p113 = por %p111, %p112
      %p114 = scmp.le.s32.totalorder 1, %s12
      %p115 = scmp.lt.s32.totalorder %s12, 3
      %p116 = pnand %p114, %p115
      %p117 = pneg %p116
      // Predicated region
      $region9: #{tpu_custom_call.1} parent=5 // pred_check
        _
      $region10: #{tpu_custom_call.1} parent=5 // pred_check_branch
        %119 = sbr.rel (%p116) target = $region12
      $region11: #{tpu_custom_call.1} parent=5 // pred_region
        %s120 = ssub.s32 %s12, 1
        // Predicated region
        $region13: #{tpu_custom_call.1} parent=11 // pred_check
          %p121 = pneg %p59
        $region14: #{tpu_custom_call.1} parent=11 // pred_check_branch
          %123 = sbr.rel (%p121) target = $region16
        $region15: #{tpu_custom_call.1} parent=11 // pred_region
          _
        $region16: #{tpu_custom_call.1} parent=11 // pred_fallthru
          _
        // Predicated region
        $region17: #{tpu_custom_call.1} parent=11 // pred_check
          %p124 = pneg %p80
        $region18: #{tpu_custom_call.1} parent=11 // pred_check_branch
          %126 = sbr.rel (%p124) target = $region20
        $region19: #{tpu_custom_call.1} parent=11 // pred_region
          _
        $region20: #{tpu_custom_call.1} parent=11 // pred_fallthru
          _
      $region12: #{tpu_custom_call.1} parent=5 // pred_fallthru
        _
      %p127 = scmp.lt.s32.totalorder %s12, 2
      // Predicated region
      $region21: #{tpu_custom_call.1} parent=5 // pred_check
        %p128 = pneg %p127
      $region22: #{tpu_custom_call.1} parent=5 // pred_check_branch
        %130 = sbr.rel (%p128) target = $region24
      $region23: #{tpu_custom_call.1} parent=5 // pred_region
        // Predicated region
        $region25: #{tpu_custom_call.1} parent=23 // pred_check
          %p131 = pneg %p32
        $region26: #{tpu_custom_call.1} parent=23 // pred_check_branch
          %133 = sbr.rel (%p131) target = $region28
        $region27: #{tpu_custom_call.1} parent=23 // pred_region
          %p134 = scmp.lt.s32.totalorder %s12, 1
          %s135 = scalar_select %p134, %s12, 1
          %s136 = smul.addr %s135, 3
          %s137 = smul.addr %s136, 4
          %s138 = scalar_lea.vmem %s0, %s137
        $region28: #{tpu_custom_call.1} parent=23 // pred_fallthru
          _
      $region24: #{tpu_custom_call.1} parent=5 // pred_fallthru
        _
      %p139 = scmp.le.s32.totalorder 1, %s12
      %p140 = scmp.lt.s32.totalorder %s12, 3
      %p141 = pnand %p139, %p140
      %p142 = pneg %p141
      // Predicated region
      $region29: #{tpu_custom_call.1} parent=5 // pred_check
        _
      $region30: #{tpu_custom_call.1} parent=5 // pred_check_branch
        %144 = sbr.rel (%p141) target = $region32
      $region31: #{tpu_custom_call.1} parent=5 // pred_region
        %s145 = ssub.s32 %s12, 1
        %p146 = scmp.lt.s32.totalorder %s17, 1
        %s147 = scalar_select %p146, %s17, 1
        %s148 = smul.addr %s147, 3
        %s149 = smul.addr %s148, 4
        %s150 = scalar_lea.vmem %s0, %s149
        %p151 = pneg %p38
        %p152 = pneg %p35
        %p153 = pneg %p59
        %p154 = pneg %p56
        %p155 = pneg %p80
        %p156 = pneg %p77
        %p157 = pneg %p106
        %p158 = pneg %p103
        %s159 = sand.u32 %s93, 1
        %s160 = scalar_lea.sflag [#allocation3], %s159
        %s161 = sand.u32 %s93, 1
        %s162 = smul.addr %s161, 16
        %s163 = scalar_lea.vmem [#allocation2], %s162
        %p164 = scmp.lt.s32.totalorder %s17, 1
        %s165 = scalar_select %p164, %s17, 1
        %s166 = smul.addr %s165, 3
        %s167 = smul.addr %s166, 4
        %s168 = scalar_lea.vmem %s0, %s167
        %v169 = vld [vmem:[%s2] sm:$0xff]
        %v170 = vld [vmem:[%s168] sm:$0xff]
        %v171 = vld [vmem:[%s168 + $0x8] sm:$0xf]
        %v172 = vld [vmem:[%s1] sm:$0xff]
        %s173 = scalar_lea.vmem %s1, 8
        %v174 = vld [vmem:[%s173] sm:$0xff]
        %177 = vst [vmem:[#allocation1] ss:$2 sm:$0xff] %v170
        %s178 = scalar_lea.vmem [#allocation1], 16
        %179 = vst [vmem:[%s178] ss:$2 sm:$0xff] %v171
        %v180 = vld.sshfl [vmem:[#allocation1] sm:$0xff pattern:$0x75316420]
        %v181 = vld.sshfl [vmem:[#allocation1 + $0x8] sm:$0xff pattern:$0x75316420]
        %v182 = vld.sshfl [vmem:[#allocation1 + $0x10] sm:$0xff pattern:$0x75316420]
        %183 = vrot.lane.b32.xlu0 %v180, 127
        %v184 = vpop.permute.xlu0 %183
        %185 = vrot.lane.b32.xlu0 %v181, 127
        %v186 = vpop.permute.xlu0 %185
        %187 = vrot.lane.b32.xlu0 %v182, 127
        %v188 = vpop.permute.xlu0 %187
        %vm189 = vcmask 1039360
        %v190 = vsel %vm189, %v184, %v186
        %v191 = vsel %vm189, %v186, %v188
        %vm192 = vcmask 31744
        %v194 = vsel %vm192, %v174, 0
        %vm196 = vcmask 1043456
        %v197 = vsel %vm196, %v190, 0
        %v199 = vsel %vm196, %v191, 0
        %201 = vmatpush.msra.mxu0 0.0
        %202 = vmatpush.msra.mxu0 0.0
        %203 = vmatpush.msra.mxu0 0.0
        %204 = vmatpush.msra.mxu0 0.0
        %205 = vmatpush.msra.mxu0 0.0
        %206 = vmatpush.msra.mxu0 0.0
        %207 = vmatpush.msra.mxu0 0.0
        %208 = vmatpush.msra.mxu0 0.0
        %209 = vmatpush.msra.mxu0 0.0
        %210 = vmatpush.msra.mxu0 0.0
        %211 = vmatpush.msra.mxu0 0.0
        %212 = vmatpush.msra.mxu0 0.0
        %213 = vmatpush.msra.mxu0 0.0
        %214 = vmatpush.msra.mxu0 0.0
        %215 = vmatpush.msra.mxu0 0.0
        %216 = vmatpush.msra.mxu0 %v197
        %217 = vmatmul.f32.gmra.mxu0 %v194
        %v218 = vpop.f32.mrf.mxu0
        %v219 = vadd.f32 0.0, %v218
        %220 = vdwg.mxu0
        %221 = vmatpush.msra.mxu0 0.0
        %222 = vmatpush.msra.mxu0 0.0
        %223 = vmatpush.msra.mxu0 0.0
        %224 = vmatpush.msra.mxu0 0.0
        %225 = vmatpush.msra.mxu0 0.0
        %226 = vmatpush.msra.mxu0 0.0
        %227 = vmatpush.msra.mxu0 0.0
        %228 = vmatpush.msra.mxu0 0.0
        %229 = vmatpush.msra.mxu0 0.0
        %230 = vmatpush.msra.mxu0 0.0
        %231 = vmatpush.msra.mxu0 0.0
        %232 = vmatpush.msra.mxu0 0.0
        %233 = vmatpush.msra.mxu0 0.0
        %234 = vmatpush.msra.mxu0 0.0
        %235 = vmatpush.msra.mxu0 0.0
        %236 = vmatpush.msra.mxu0 %v199
        %237 = vmatmul.f32.gmra.mxu0 %v194
        %v238 = vpop.f32.mrf.mxu0
        %v239 = vadd.f32 0.0, %v238
        %240 = vdwg.mxu0
        %241 = vst [vmem:[#allocation1] ss:$2 sm:$0xff] %v170
        %v242 = vld.sshfl [vmem:[#allocation1] sm:$0xff pattern:$0x75316420]
        %v243 = vld.sshfl [vmem:[#allocation1 + $0x8] sm:$0xff pattern:$0x75316420]
        %v245 = vsel %vm192, %v172, 0
        %v247 = vsel %vm196, %v242, 0
        %v249 = vsel %vm196, %v243, 0
        %251 = vmatpush.msra.mxu0 0.0
        %252 = vmatpush.msra.mxu0 0.0
        %253 = vmatpush.msra.mxu0 0.0
        %254 = vmatpush.msra.mxu0 0.0
        %255 = vmatpush.msra.mxu0 0.0
        %256 = vmatpush.msra.mxu0 0.0
        %257 = vmatpush.msra.mxu0 0.0
        %258 = vmatpush.msra.mxu0 0.0
        %259 = vmatpush.msra.mxu0 0.0
        %260 = vmatpush.msra.mxu0 0.0
        %261 = vmatpush.msra.mxu0 0.0
        %262 = vmatpush.msra.mxu0 0.0
        %263 = vmatpush.msra.mxu0 0.0
        %264 = vmatpush.msra.mxu0 0.0
        %265 = vmatpush.msra.mxu0 0.0
        %266 = vmatpush.msra.mxu0 %v247
        %267 = vmatmul.f32.gmra.mxu0 %v245
        %v268 = vpop.f32.mrf.mxu0
        %v269 = vadd.f32 %v219, %v268
        %270 = vdwg.mxu0
        %271 = vmatpush.msra.mxu0 0.0
        %272 = vmatpush.msra.mxu0 0.0
        %273 = vmatpush.msra.mxu0 0.0
        %274 = vmatpush.msra.mxu0 0.0
        %275 = vmatpush.msra.mxu0 0.0
        %276 = vmatpush.msra.mxu0 0.0
        %277 = vmatpush.msra.mxu0 0.0
        %278 = vmatpush.msra.mxu0 0.0
        %279 = vmatpush.msra.mxu0 0.0
        %280 = vmatpush.msra.mxu0 0.0
        %281 = vmatpush.msra.mxu0 0.0
        %282 = vmatpush.msra.mxu0 0.0
        %283 = vmatpush.msra.mxu0 0.0
        %284 = vmatpush.msra.mxu0 0.0
        %285 = vmatpush.msra.mxu0 0.0
        %286 = vmatpush.msra.mxu0 %v249
        %287 = vmatmul.f32.gmra.mxu0 %v245
        %v288 = vpop.f32.mrf.mxu0
        %v289 = vadd.f32 %v239, %v288
        %290 = vdwg.mxu0
        %s291 = scalar_lea.vmem %s1, 16
        %v292 = vld [vmem:[%s291] sm:$0xff]
        %293 = vst [vmem:[#allocation1] ss:$2 sm:$0xff] %v170
        %s294 = scalar_lea.vmem [#allocation1], 16
        %295 = vst [vmem:[%s294] ss:$2 sm:$0xff] %v171
        %v296 = vld.sshfl [vmem:[#allocation1] sm:$0xff pattern:$0x75316420]
        %v297 = vld.sshfl [vmem:[#allocation1 + $0x8] sm:$0xff pattern:$0x75316420]
        %v298 = vld.sshfl [vmem:[#allocation1 + $0x10] sm:$0xff pattern:$0x75316420]
        %299 = vrot.lane.b32.xlu0 %v296, 126
        %v300 = vpop.permute.xlu0 %299
        %301 = vrot.lane.b32.xlu0 %v297, 126
        %v302 = vpop.permute.xlu0 %301
        %303 = vrot.lane.b32.xlu0 %v298, 126
        %v304 = vpop.permute.xlu0 %303
        %vm305 = vcmask 1031168
        %v306 = vsel %vm305, %v300, %v302
        %v307 = vsel %vm305, %v302, %v304
        %v309 = vsel %vm192, %v292, 0
        %v311 = vsel %vm196, %v306, 0
        %v313 = vsel %vm196, %v307, 0
        %315 = vmatpush.msra.mxu0 0.0
        %316 = vmatpush.msra.mxu0 0.0
        %317 = vmatpush.msra.mxu0 0.0
        %318 = vmatpush.msra.mxu0 0.0
        %319 = vmatpush.msra.mxu0 0.0
        %320 = vmatpush.msra.mxu0 0.0
        %321 = vmatpush.msra.mxu0 0.0
        %322 = vmatpush.msra.mxu0 0.0
        %323 = vmatpush.msra.mxu0 0.0
        %324 = vmatpush.msra.mxu0 0.0
        %325 = vmatpush.msra.mxu0 0.0
        %326 = vmatpush.msra.mxu0 0.0
        %327 = vmatpush.msra.mxu0 0.0
        %328 = vmatpush.msra.mxu0 0.0
        %329 = vmatpush.msra.mxu0 0.0
        %330 = vmatpush.msra.mxu0 %v311
        %331 = vmatmul.f32.gmra.mxu0 %v309
        %v332 = vpop.f32.mrf.mxu0
        %v333 = vadd.f32 0.0, %v332
        %334 = vdwg.mxu0
        %335 = vmatpush.msra.mxu0 0.0
        %336 = vmatpush.msra.mxu0 0.0
        %337 = vmatpush.msra.mxu0 0.0
        %338 = vmatpush.msra.mxu0 0.0
        %339 = vmatpush.msra.mxu0 0.0
        %340 = vmatpush.msra.mxu0 0.0
        %341 = vmatpush.msra.mxu0 0.0
        %342 = vmatpush.msra.mxu0 0.0
        %343 = vmatpush.msra.mxu0 0.0
        %344 = vmatpush.msra.mxu0 0.0
        %345 = vmatpush.msra.mxu0 0.0
        %346 = vmatpush.msra.mxu0 0.0
        %347 = vmatpush.msra.mxu0 0.0
        %348 = vmatpush.msra.mxu0 0.0
        %349 = vmatpush.msra.mxu0 0.0
        %350 = vmatpush.msra.mxu0 %v313
        %351 = vmatmul.f32.gmra.mxu0 %v309
        %v352 = vpop.f32.mrf.mxu0
        %v353 = vadd.f32 0.0, %v352
        %354 = vdwg.mxu0
        %v355 = vadd.f32 %v269, %v333
        %v356 = vadd.f32 %v289, %v353
        %s357 = scalar_lea.vmem %s1, 24
        %v358 = vld [vmem:[%s357] sm:$0xff]
        %359 = vst [vmem:[#allocation1] ss:$2 sm:$0xff] %v170
        %s360 = scalar_lea.vmem [#allocation1], 16
        %361 = vst [vmem:[%s360] ss:$2 sm:$0xff] %v171
        %v362 = vld.sshfl [vmem:[#allocation1] sm:$0xff pattern:$0x75316420]
        %v363 = vld.sshfl [vmem:[#allocation1 + $0x8] sm:$0xff pattern:$0x75316420]
        %v364 = vld.sshfl [vmem:[#allocation1 + $0x10] sm:$0xff pattern:$0x75316420]
        %365 = vrot.lane.b32.xlu0 %v362, 112
        %v366 = vpop.permute.xlu0 %365
        %367 = vrot.lane.b32.xlu0 %v363, 112
        %v368 = vpop.permute.xlu0 %367
        %369 = vrot.lane.b32.xlu0 %v364, 112
        %v370 = vpop.permute.xlu0 %369
        %vm371 = vcmask 916480
        %v372 = vsel %vm371, %v366, %v368
        %v373 = vsel %vm371, %v368, %v370
        %v375 = vsel %vm192, %v358, 0
        %v377 = vsel %vm196, %v372, 0
        %v379 = vsel %vm196, %v373, 0
        %381 = vmatpush.msra.mxu0 0.0
        %382 = vmatpush.msra.mxu0 0.0
        %383 = vmatpush.msra.mxu0 0.0
        %384 = vmatpush.msra.mxu0 0.0
        %385 = vmatpush.msra.mxu0 0.0
        %386 = vmatpush.msra.mxu0 0.0
        %387 = vmatpush.msra.mxu0 0.0
        %388 = vmatpush.msra.mxu0 0.0
        %389 = vmatpush.msra.mxu0 0.0
        %390 = vmatpush.msra.mxu0 0.0
        %391 = vmatpush.msra.mxu0 0.0
        %392 = vmatpush.msra.mxu0 0.0
        %393 = vmatpush.msra.mxu0 0.0
        %394 = vmatpush.msra.mxu0 0.0
        %395 = vmatpush.msra.mxu0 0.0
        %396 = vmatpush.msra.mxu0 %v377
        %397 = vmatmul.f32.gmra.mxu0 %v375
        %v398 = vpop.f32.mrf.mxu0
        %v399 = vadd.f32 0.0, %v398
        %400 = vdwg.mxu0
        %401 = vmatpush.msra.mxu0 0.0
        %402 = vmatpush.msra.mxu0 0.0
        %403 = vmatpush.msra.mxu0 0.0
        %404 = vmatpush.msra.mxu0 0.0
        %405 = vmatpush.msra.mxu0 0.0
        %406 = vmatpush.msra.mxu0 0.0
        %407 = vmatpush.msra.mxu0 0.0
        %408 = vmatpush.msra.mxu0 0.0
        %409 = vmatpush.msra.mxu0 0.0
        %410 = vmatpush.msra.mxu0 0.0
        %411 = vmatpush.msra.mxu0 0.0
        %412 = vmatpush.msra.mxu0 0.0
        %413 = vmatpush.msra.mxu0 0.0
        %414 = vmatpush.msra.mxu0 0.0
        %415 = vmatpush.msra.mxu0 0.0
        %416 = vmatpush.msra.mxu0 %v379
        %417 = vmatmul.f32.gmra.mxu0 %v375
        %v418 = vpop.f32.mrf.mxu0
        %v419 = vadd.f32 0.0, %v418
        %420 = vdwg.mxu0
        %v421 = vadd.f32 %v355, %v399
        %v422 = vadd.f32 %v356, %v419
        %s423 = scalar_lea.vmem %s1, 32
        %v424 = vld [vmem:[%s423] sm:$0xff]
        %425 = vst [vmem:[#allocation1] ss:$2 sm:$0xff] %v170
        %s426 = scalar_lea.vmem [#allocation1], 16
        %427 = vst [vmem:[%s426] ss:$2 sm:$0xff] %v171
        %v428 = vld.sshfl [vmem:[#allocation1] sm:$0xff pattern:$0x75316420]
        %v429 = vld.sshfl [vmem:[#allocation1 + $0x8] sm:$0xff pattern:$0x75316420]
        %v430 = vld.sshfl [vmem:[#allocation1 + $0x10] sm:$0xff pattern:$0x75316420]
        %431 = vrot.lane.b32.xlu0 %v428, 111
        %v432 = vpop.permute.xlu0 %431
        %433 = vrot.lane.b32.xlu0 %v429, 111
        %v434 = vpop.permute.xlu0 %433
        %435 = vrot.lane.b32.xlu0 %v430, 111
        %v436 = vpop.permute.xlu0 %435
        %vm437 = vcmask 908288
        %v438 = vsel %vm437, %v432, %v434
        %v439 = vsel %vm437, %v434, %v436
        %v441 = vsel %vm192, %v424, 0
        %v443 = vsel %vm196, %v438, 0
        %v445 = vsel %vm196, %v439, 0
        %447 = vmatpush.msra.mxu0 0.0
        %448 = vmatpush.msra.mxu0 0.0
        %449 = vmatpush.msra.mxu0 0.0
        %450 = vmatpush.msra.mxu0 0.0
        %451 = vmatpush.msra.mxu0 0.0
        %452 = vmatpush.msra.mxu0 0.0
        %453 = vmatpush.msra.mxu0 0.0
        %454 = vmatpush.msra.mxu0 0.0
        %455 = vmatpush.msra.mxu0 0.0
        %456 = vmatpush.msra.mxu0 0.0
        %457 = vmatpush.msra.mxu0 0.0
        %458 = vmatpush.msra.mxu0 0.0
        %459 = vmatpush.msra.mxu0 0.0
        %460 = vmatpush.msra.mxu0 0.0
        %461 = vmatpush.msra.mxu0 0.0
        %462 = vmatpush.msra.mxu0 %v443
        %463 = vmatmul.f32.gmra.mxu0 %v441
        %v464 = vpop.f32.mrf.mxu0
        %v465 = vadd.f32 0.0, %v464
        %466 = vdwg.mxu0
        %467 = vmatpush.msra.mxu0 0.0
        %468 = vmatpush.msra.mxu0 0.0
        %469 = vmatpush.msra.mxu0 0.0
        %470 = vmatpush.msra.mxu0 0.0
        %471 = vmatpush.msra.mxu0 0.0
        %472 = vmatpush.msra.mxu0 0.0
        %473 = vmatpush.msra.mxu0 0.0
        %474 = vmatpush.msra.mxu0 0.0
        %475 = vmatpush.msra.mxu0 0.0
        %476 = vmatpush.msra.mxu0 0.0
        %477 = vmatpush.msra.mxu0 0.0
        %478 = vmatpush.msra.mxu0 0.0
        %479 = vmatpush.msra.mxu0 0.0
        %480 = vmatpush.msra.mxu0 0.0
        %481 = vmatpush.msra.mxu0 0.0
        %482 = vmatpush.msra.mxu0 %v445
        %483 = vmatmul.f32.gmra.mxu0 %v441
        %v484 = vpop.f32.mrf.mxu0
        %v485 = vadd.f32 0.0, %v484
        %486 = vdwg.mxu0
        %v487 = vadd.f32 %v421, %v465
        %v488 = vadd.f32 %v422, %v485
        %s489 = scalar_lea.vmem %s1, 40
        %v490 = vld [vmem:[%s489] sm:$0xff]
        %491 = vst [vmem:[#allocation1] ss:$2 sm:$0xff] %v170
        %s492 = scalar_lea.vmem [#allocation1], 16
        %493 = vst [vmem:[%s492] ss:$2 sm:$0xff] %v171
        %v494 = vld.sshfl [vmem:[#allocation1] sm:$0xff pattern:$0x75316420]
        %v495 = vld.sshfl [vmem:[#allocation1 + $0x8] sm:$0xff pattern:$0x75316420]
        %v496 = vld.sshfl [vmem:[#allocation1 + $0x10] sm:$0xff pattern:$0x75316420]
        %497 = vrot.lane.b32.xlu0 %v494, 110
        %v498 = vpop.permute.xlu0 %497
        %499 = vrot.lane.b32.xlu0 %v495, 110
        %v500 = vpop.permute.xlu0 %499
        %501 = vrot.lane.b32.xlu0 %v496, 110
        %v502 = vpop.permute.xlu0 %501
        %vm503 = vcmask 900096
        %v504 = vsel %vm503, %v498, %v500
        %v505 = vsel %vm503, %v500, %v502
        %v507 = vsel %vm192, %v490, 0
        %v509 = vsel %vm196, %v504, 0
        %v511 = vsel %vm196, %v505, 0
        %513 = vmatpush.msra.mxu0 0.0
        %514 = vmatpush.msra.mxu0 0.0
        %515 = vmatpush.msra.mxu0 0.0
        %516 = vmatpush.msra.mxu0 0.0
        %517 = vmatpush.msra.mxu0 0.0
        %518 = vmatpush.msra.mxu0 0.0
        %519 = vmatpush.msra.mxu0 0.0
        %520 = vmatpush.msra.mxu0 0.0
        %521 = vmatpush.msra.mxu0 0.0
        %522 = vmatpush.msra.mxu0 0.0
        %523 = vmatpush.msra.mxu0 0.0
        %524 = vmatpush.msra.mxu0 0.0
        %525 = vmatpush.msra.mxu0 0.0
        %526 = vmatpush.msra.mxu0 0.0
        %527 = vmatpush.msra.mxu0 0.0
        %528 = vmatpush.msra.mxu0 %v509
        %529 = vmatmul.f32.gmra.mxu0 %v507
        %v530 = vpop.f32.mrf.mxu0
        %v531 = vadd.f32 0.0, %v530
        %532 = vdwg.mxu0
        %533 = vmatpush.msra.mxu0 0.0
        %534 = vmatpush.msra.mxu0 0.0
        %535 = vmatpush.msra.mxu0 0.0
        %536 = vmatpush.msra.mxu0 0.0
        %537 = vmatpush.msra.mxu0 0.0
        %538 = vmatpush.msra.mxu0 0.0
        %539 = vmatpush.msra.mxu0 0.0
        %540 = vmatpush.msra.mxu0 0.0
        %541 = vmatpush.msra.mxu0 0.0
        %542 = vmatpush.msra.mxu0 0.0
        %543 = vmatpush.msra.mxu0 0.0
        %544 = vmatpush.msra.mxu0 0.0
        %545 = vmatpush.msra.mxu0 0.0
        %546 = vmatpush.msra.mxu0 0.0
        %547 = vmatpush.msra.mxu0 0.0
        %548 = vmatpush.msra.mxu0 %v511
        %549 = vmatmul.f32.gmra.mxu0 %v507
        %v550 = vpop.f32.mrf.mxu0
        %v551 = vadd.f32 0.0, %v550
        %552 = vdwg.mxu0
        %v553 = vadd.f32 %v487, %v531
        %v554 = vadd.f32 %v488, %v551
        %s555 = scalar_lea.vmem %s1, 48
        %v556 = vld [vmem:[%s555] sm:$0xff]
        %557 = vst [vmem:[#allocation1] ss:$2 sm:$0xff] %v170
        %s558 = scalar_lea.vmem [#allocation1], 16
        %559 = vst [vmem:[%s558] ss:$2 sm:$0xff] %v171
        %v560 = vld.sshfl [vmem:[#allocation1] sm:$0xff pattern:$0x75316420]
        %v561 = vld.sshfl [vmem:[#allocation1 + $0x8] sm:$0xff pattern:$0x75316420]
        %v562 = vld.sshfl [vmem:[#allocation1 + $0x10] sm:$0xff pattern:$0x75316420]
        %563 = vrot.lane.b32.xlu0 %v560, 96
        %v564 = vpop.permute.xlu0 %563
        %565 = vrot.lane.b32.xlu0 %v561, 96
        %v566 = vpop.permute.xlu0 %565
        %567 = vrot.lane.b32.xlu0 %v562, 96
        %v568 = vpop.permute.xlu0 %567
        %vm569 = vcmask 785408
        %v570 = vsel %vm569, %v564, %v566
        %v571 = vsel %vm569, %v566, %v568
        %v573 = vsel %vm192, %v556, 0
        %v575 = vsel %vm196, %v570, 0
        %v577 = vsel %vm196, %v571, 0
        %579 = vmatpush.msra.mxu0 0.0
        %580 = vmatpush.msra.mxu0 0.0
        %581 = vmatpush.msra.mxu0 0.0
        %582 = vmatpush.msra.mxu0 0.0
        %583 = vmatpush.msra.mxu0 0.0
        %584 = vmatpush.msra.mxu0 0.0
        %585 = vmatpush.msra.mxu0 0.0
        %586 = vmatpush.msra.mxu0 0.0
        %587 = vmatpush.msra.mxu0 0.0
        %588 = vmatpush.msra.mxu0 0.0
        %589 = vmatpush.msra.mxu0 0.0
        %590 = vmatpush.msra.mxu0 0.0
        %591 = vmatpush.msra.mxu0 0.0
        %592 = vmatpush.msra.mxu0 0.0
        %593 = vmatpush.msra.mxu0 0.0
        %594 = vmatpush.msra.mxu0 %v575
        %595 = vmatmul.f32.gmra.mxu0 %v573
        %v596 = vpop.f32.mrf.mxu0
        %v597 = vadd.f32 0.0, %v596
        %598 = vdwg.mxu0
        %599 = vmatpush.msra.mxu0 0.0
        %600 = vmatpush.msra.mxu0 0.0
        %601 = vmatpush.msra.mxu0 0.0
        %602 = vmatpush.msra.mxu0 0.0
        %603 = vmatpush.msra.mxu0 0.0
        %604 = vmatpush.msra.mxu0 0.0
        %605 = vmatpush.msra.mxu0 0.0
        %606 = vmatpush.msra.mxu0 0.0
        %607 = vmatpush.msra.mxu0 0.0
        %608 = vmatpush.msra.mxu0 0.0
        %609 = vmatpush.msra.mxu0 0.0
        %610 = vmatpush.msra.mxu0 0.0
        %611 = vmatpush.msra.mxu0 0.0
        %612 = vmatpush.msra.mxu0 0.0
        %613 = vmatpush.msra.mxu0 0.0
        %614 = vmatpush.msra.mxu0 %v577
        %615 = vmatmul.f32.gmra.mxu0 %v573
        %v616 = vpop.f32.mrf.mxu0
        %v617 = vadd.f32 0.0, %v616
        %618 = vdwg.mxu0
        %v619 = vadd.f32 %v553, %v597
        %v620 = vadd.f32 %v554, %v617
        %s621 = scalar_lea.vmem %s1, 56
        %v622 = vld [vmem:[%s621] sm:$0xff]
        %623 = vst [vmem:[#allocation1] ss:$2 sm:$0xff] %v170
        %s624 = scalar_lea.vmem [#allocation1], 16
        %625 = vst [vmem:[%s624] ss:$2 sm:$0xff] %v171
        %v626 = vld.sshfl [vmem:[#allocation1] sm:$0xff pattern:$0x75316420]
        %v627 = vld.sshfl [vmem:[#allocation1 + $0x8] sm:$0xff pattern:$0x75316420]
        %v628 = vld.sshfl [vmem:[#allocation1 + $0x10] sm:$0xff pattern:$0x75316420]
        %629 = vrot.lane.b32.xlu0 %v626, 95
        %v630 = vpop.permute.xlu0 %629
        %631 = vrot.lane.b32.xlu0 %v627, 95
        %v632 = vpop.permute.xlu0 %631
        %633 = vrot.lane.b32.xlu0 %v628, 95
        %v634 = vpop.permute.xlu0 %633
        %vm635 = vcmask 777216
        %v636 = vsel %vm635, %v630, %v632
        %v637 = vsel %vm635, %v632, %v634
        %v639 = vsel %vm192, %v622, 0
        %v641 = vsel %vm196, %v636, 0
        %v643 = vsel %vm196, %v637, 0
        %645 = vmatpush.msra.mxu0 0.0
        %646 = vmatpush.msra.mxu0 0.0
        %647 = vmatpush.msra.mxu0 0.0
        %648 = vmatpush.msra.mxu0 0.0
        %649 = vmatpush.msra.mxu0 0.0
        %650 = vmatpush.msra.mxu0 0.0
        %651 = vmatpush.msra.mxu0 0.0
        %652 = vmatpush.msra.mxu0 0.0
        %653 = vmatpush.msra.mxu0 0.0
        %654 = vmatpush.msra.mxu0 0.0
        %655 = vmatpush.msra.mxu0 0.0
        %656 = vmatpush.msra.mxu0 0.0
        %657 = vmatpush.msra.mxu0 0.0
        %658 = vmatpush.msra.mxu0 0.0
        %659 = vmatpush.msra.mxu0 0.0
        %660 = vmatpush.msra.mxu0 %v641
        %661 = vmatmul.f32.gmra.mxu0 %v639
        %v662 = vpop.f32.mrf.mxu0
        %v663 = vadd.f32 0.0, %v662
        %664 = vdwg.mxu0
        %665 = vmatpush.msra.mxu0 0.0
        %666 = vmatpush.msra.mxu0 0.0
        %667 = vmatpush.msra.mxu0 0.0
        %668 = vmatpush.msra.mxu0 0.0
        %669 = vmatpush.msra.mxu0 0.0
        %670 = vmatpush.msra.mxu0 0.0
        %671 = vmatpush.msra.mxu0 0.0
        %672 = vmatpush.msra.mxu0 0.0
        %673 = vmatpush.msra.mxu0 0.0
        %674 = vmatpush.msra.mxu0 0.0
        %675 = vmatpush.msra.mxu0 0.0
        %676 = vmatpush.msra.mxu0 0.0
        %677 = vmatpush.msra.mxu0 0.0
        %678 = vmatpush.msra.mxu0 0.0
        %679 = vmatpush.msra.mxu0 0.0
        %680 = vmatpush.msra.mxu0 %v643
        %681 = vmatmul.f32.gmra.mxu0 %v639
        %v682 = vpop.f32.mrf.mxu0
        %v683 = vadd.f32 0.0, %v682
        %684 = vdwg.mxu0
        %v685 = vadd.f32 %v619, %v663
        %v686 = vadd.f32 %v620, %v683
        %s687 = scalar_lea.vmem %s1, 64
        %v688 = vld [vmem:[%s687] sm:$0xff]
        %689 = vst [vmem:[#allocation1] ss:$2 sm:$0xff] %v170
        %s690 = scalar_lea.vmem [#allocation1], 16
        %691 = vst [vmem:[%s690] ss:$2 sm:$0xff] %v171
        %v692 = vld.sshfl [vmem:[#allocation1] sm:$0xff pattern:$0x75316420]
        %v693 = vld.sshfl [vmem:[#allocation1 + $0x8] sm:$0xff pattern:$0x75316420]
        %v694 = vld.sshfl [vmem:[#allocation1 + $0x10] sm:$0xff pattern:$0x75316420]
        %695 = vrot.lane.b32.xlu0 %v692, 94
        %v696 = vpop.permute.xlu0 %695
        %697 = vrot.lane.b32.xlu0 %v693, 94
        %v698 = vpop.permute.xlu0 %697
        %699 = vrot.lane.b32.xlu0 %v694, 94
        %v700 = vpop.permute.xlu0 %699
        %vm701 = vcmask 769024
        %v702 = vsel %vm701, %v696, %v698
        %v703 = vsel %vm701, %v698, %v700
        %v705 = vsel %vm192, %v688, 0
        %v707 = vsel %vm196, %v702, 0
        %v709 = vsel %vm196, %v703, 0
        %711 = vmatpush.msra.mxu0 0.0
        %712 = vmatpush.msra.mxu0 0.0
        %713 = vmatpush.msra.mxu0 0.0
        %714 = vmatpush.msra.mxu0 0.0
        %715 = vmatpush.msra.mxu0 0.0
        %716 = vmatpush.msra.mxu0 0.0
        %717 = vmatpush.msra.mxu0 0.0
        %718 = vmatpush.msra.mxu0 0.0
        %719 = vmatpush.msra.mxu0 0.0
        %720 = vmatpush.msra.mxu0 0.0
        %721 = vmatpush.msra.mxu0 0.0
        %722 = vmatpush.msra.mxu0 0.0
        %723 = vmatpush.msra.mxu0 0.0
        %724 = vmatpush.msra.mxu0 0.0
        %725 = vmatpush.msra.mxu0 0.0
        %726 = vmatpush.msra.mxu0 %v707
        %727 = vmatmul.f32.gmra.mxu0 %v705
        %v728 = vpop.f32.mrf.mxu0
        %v729 = vadd.f32 0.0, %v728
        %730 = vdwg.mxu0
        %731 = vmatpush.msra.mxu0 0.0
        %732 = vmatpush.msra.mxu0 0.0
        %733 = vmatpush.msra.mxu0 0.0
        %734 = vmatpush.msra.mxu0 0.0
        %735 = vmatpush.msra.mxu0 0.0
        %736 = vmatpush.msra.mxu0 0.0
        %737 = vmatpush.msra.mxu0 0.0
        %738 = vmatpush.msra.mxu0 0.0
        %739 = vmatpush.msra.mxu0 0.0
        %740 = vmatpush.msra.mxu0 0.0
        %741 = vmatpush.msra.mxu0 0.0
        %742 = vmatpush.msra.mxu0 0.0
        %743 = vmatpush.msra.mxu0 0.0
        %744 = vmatpush.msra.mxu0 0.0
        %745 = vmatpush.msra.mxu0 0.0
        %746 = vmatpush.msra.mxu0 %v709
        %747 = vmatmul.f32.gmra.mxu0 %v705
        %v748 = vpop.f32.mrf.mxu0
        %v749 = vadd.f32 0.0, %v748
        %750 = vdwg.mxu0
        %v751 = vadd.f32 %v685, %v729
        %v752 = vadd.f32 %v686, %v749
        %754 = vset.pattern.permute.xlu0 0
        %755 = vperm.xlu0 %754, %v169
        %v756 = vpop.permute.xlu0 %755
        %v758 = vadd.f32 %v751, %v756
        %v759 = vadd.f32 %v752, %v756
        %760 = vst [vmem:[%s163] sm:$0xff] %v758
        %761 = vst [vmem:[%s163 + $0x8] sm:$0xff] %v759
        %s762 = sand.u32 %s93, 1
        %s763 = scalar_lea.sflag [#allocation3], %s762
        %s764 = sand.u32 %s93, 1
        %s765 = smul.addr %s764, 16
        %s766 = scalar_lea.vmem [#allocation2], %s765
        // Predicated region
        $region33: #{tpu_custom_call.1} parent=31 // pred_check
          %p767 = pneg %p103
        $region34: #{tpu_custom_call.1} parent=31 // pred_check_branch
          %769 = sbr.rel (%p767) target = $region36
        $region35: #{tpu_custom_call.1} parent=31 // pred_region
          %771 = vsyncadd %s763, 0
          %s772 = smul.addr %s17, 2
          %s773 = smul.addr %s772, 8
          %s774 = scalar_lea.hbm %s3, %s773
          %s776 = sshll.u32 %s766, 4
          %s777 = int_to_ptr.vmem [resolvable:$true] %s776
          %s778 = sshll.u32 %s774, 4
          %s779 = int_to_ptr.hbm [resolvable:$true] %s778
          %781 = dma.vmem_to_hbm [thread:$0]  %s777, 256, %s779, %s763
        $region36: #{tpu_custom_call.1} parent=31 // pred_fallthru
          _
      $region32: #{tpu_custom_call.1} parent=5 // pred_fallthru
        _
      %p782 = scmp.le.s32.totalorder 2, %s12
      // Predicated region
      $region37: #{tpu_custom_call.1} parent=5 // pred_check
        %p783 = pneg %p782
      $region38: #{tpu_custom_call.1} parent=5 // pred_check_branch
        %785 = sbr.rel (%p783) target = $region40
      $region39: #{tpu_custom_call.1} parent=5 // pred_region
        %s786 = ssub.s32 %s12, 2
        // Predicated region
        $region41: #{tpu_custom_call.1} parent=39 // pred_check
          %p787 = pneg %p109
        $region42: #{tpu_custom_call.1} parent=39 // pred_check_branch
          %789 = sbr.rel (%p787) target = $region44
        $region43: #{tpu_custom_call.1} parent=39 // pred_region
          %s790 = sand.u32 %s94, 1
          %s791 = scalar_lea.sflag [#allocation3], %s790
          %s792 = sand.u32 %s94, 1
          %s793 = smul.addr %s792, 16
          %s794 = scalar_lea.vmem [#allocation2], %s793
          %796 = dma.done %s791, 256
        $region44: #{tpu_custom_call.1} parent=39 // pred_fallthru
          _
      $region40: #{tpu_custom_call.1} parent=5 // pred_fallthru
        _
    $region6: #{tpu_custom_call.1} parent=1 // loop_footer
      %s16 = sadd.s32 1, %s12
    $region7: #{tpu_custom_call.1} parent=1 // loop_footer_branch
      %11 = sbr.rel target = $region3
    $region8: #{tpu_custom_call.1} parent=1 // loop_exit
      _
    %797 = vsyncpa [#allocation3], 1
    %s798 = scalar_lea.sflag [#allocation3], 1
    %799 = vsyncpa %s798, 1

</llo_original>
